<compile_context>
chip_gen: v6e
topology: v6e:2x2x1
jax: 0.10.0
libtpu: 0.0.40
codegen_flags: <defaults>
</compile_context>

<pallas_src>
import jax
import jax.numpy as jnp
from jax.experimental import pallas as pl
from jax.experimental.pallas import tpu as pltpu


def _round_up(x, m):
    return (x + m - 1) // m * m


def _dual_kernel(x_ref, w_enc_ref, b_enc_ref, w_dec_ref, b_dec_ref, o_ref):
    # Fused encoders: [e1 | e2] in one MXU pass.
    e = jnp.dot(x_ref[...], w_enc_ref[...],
                preferred_element_type=jnp.float32) + b_enc_ref[...]
    # TODO(synk): nn.Dropout(p=0.6) is treated as identity (eval/inference mode);
    # training-mode masking would use pltpu.prng_seed + pltpu.stateful_bernoulli.
    # Fused decoders + conv + e2 pass-through: one lane-dense MXU pass, one store.
    o_ref[...] = (jnp.dot(e, w_dec_ref[...],
                          preferred_element_type=jnp.float32) + b_dec_ref[...])


def simple_dual_forward(x1, x2, params):
    """Fused forward of SimpleDualModel.

    params = ((w11, b11), (w12, b12), (w21, b21), (w22, b22), (wc, bc))
    with every weight already in (in_features, out_features) layout.
    Returns (fc1_2(e1), fc2_2(e2), conv(e1), e2)  [dropout = identity].
    """
    (w11, b11), (w12, b12), (w21, b21), (w22, b22), (wc, bc) = params
    B, d1 = x1.shape
    d2 = x2.shape[1]
    h = w11.shape[1]
    h2 = 2 * h
    d_in = d1 + d2

    # ---- plain-JAX glue: build the two fused weight slabs (no transposes) ----
    # Encoder: block-diagonal (d1+d2, 2h) so [x1|x2] @ W_enc = [e1|e2].
    w_enc = jnp.zeros((d_in, h2), jnp.float32)
    w_enc = w_enc.at[:d1, :h].set(w11)
    w_enc = w_enc.at[d1:, h:].set(w21)
    b_enc = jnp.concatenate([b11, b21])[None, :]

    # Decoder: (2h, n_pad) slab producing [o1 | o2 | o3 | e2 | zero-pad] in one dot.
    n_raw = d1 + d2 + 2 * h
    n_pad = _round_up(n_raw, 128)            # lane-dense, unmasked stores
    w_dec = jnp.zeros((h2, n_pad), jnp.float32)
    w_dec = w_dec.at[:h, :d1].set(w12)                               # fc1_2(e1)
    w_dec = w_dec.at[h:, d1:d1 + d2].set(w22)                        # fc2_2(e2)
    w_dec = w_dec.at[:h, d1 + d2:d1 + d2 + h].set(wc)                # conv(e1)
    w_dec = w_dec.at[h:, d1 + d2 + h:n_raw].set(jnp.eye(h, dtype=jnp.float32))  # e2
    b_dec = jnp.zeros((1, n_pad), jnp.float32)
    b_dec = b_dec.at[0, :d1].set(b12)
    b_dec = b_dec.at[0, d1:d1 + d2].set(b22)
    b_dec = b_dec.at[0, d1 + d2:d1 + d2 + h].set(bc)

    # Lane-concat inputs; pad batch to a multiple of the batch tile.
    x = jnp.concatenate([x1, x2], axis=1)
    tb = min(128, _round_up(B, 8))
    b_pad = _round_up(B, tb)
    if b_pad != B:
        x = jnp.pad(x, ((0, b_pad - B), (0, 0)))

    slab = pl.pallas_call(
        _dual_kernel,
        out_shape=jax.ShapeDtypeStruct((b_pad, n_pad), jnp.float32),
        grid=(b_pad // tb,),
        in_specs=[
            pl.BlockSpec((tb, d_in), lambda i: (i, 0)),   # activations: tiled over batch
            pl.BlockSpec((d_in, h2), lambda i: (0, 0)),   # weights/biases: resident
            pl.BlockSpec((1, h2), lambda i: (0, 0)),
            pl.BlockSpec((h2, n_pad), lambda i: (0, 0)),
            pl.BlockSpec((1, n_pad), lambda i: (0, 0)),
        ],
        out_specs=pl.BlockSpec((tb, n_pad), lambda i: (i, 0)),
        compiler_params=pltpu.CompilerParams(
            dimension_semantics=("parallel",)),           # megacore-shardable batch axis
    )(x, w_enc, b_enc, w_dec, b_dec)

    o1 = slab[:B, :d1]                                    # fc1_2(dropout(e1))
    o2 = slab[:B, d1:d1 + d2]                             # fc2_2(dropout(e2))
    o3 = slab[:B, d1 + d2:d1 + d2 + h]                    # conv(e1)
    e2 = slab[:B, d1 + d2 + h:d1 + d2 + 2 * h]            # e2
    return o1, o2, o3, e2


def _init_linear(key, in_features, out_features):
    """nn.Linear-style init, but stored directly as (in, out) — no transposes needed."""
    kw, kb = jax.random.split(key)
    bound = 1.0 / jnp.sqrt(jnp.float32(in_features))
    w = jax.random.uniform(kw, (in_features, out_features), jnp.float32, -bound, bound)
    b = jax.random.uniform(kb, (out_features,), jnp.float32, -bound, bound)
    return w, b


if __name__ == "__main__":
    # Small shapes consistent with the module.
    batch, input_dim, output_dim, hidden_dim = 8, 32, 24, 16

    key = jax.random.PRNGKey(0)
    k_x1, k_x2, k11, k12, k21, k22, kc = jax.random.split(key, 7)

    x1 = jax.random.normal(k_x1, (batch, input_dim), jnp.float32)
    x2 = jax.random.normal(k_x2, (batch, output_dim), jnp.float32)

    params = (
        _init_linear(k11, input_dim, hidden_dim),    # fc1_1
        _init_linear(k12, hidden_dim, input_dim),    # fc1_2
        _init_linear(k21, output_dim, hidden_dim),   # fc2_1
        _init_linear(k22, hidden_dim, output_dim),   # fc2_2
        _init_linear(kc, hidden_dim, hidden_dim),    # conv (a Linear)
    )

    fwd = jax.jit(simple_dual_forward)
    outs = jax.block_until_ready(fwd(x1, x2, params))

    # Plain-JAX reference (dropout in eval mode = identity).
    (w11, b11), (w12, b12), (w21, b21), (w22, b22), (wc, bc) = params
    e1 = x1 @ w11 + b11
    e2 = x2 @ w21 + b21
    ref = (e1 @ w12 + b12, e2 @ w22 + b22, e1 @ wc + bc, e2)

    for got, want in zip(outs, ref):
        assert got.shape == want.shape and got.dtype == want.dtype
        assert jnp.allclose(got, want, atol=1e-5, rtol=1e-5)

    print("KERNEL_OK")
</pallas_src>

<mosaic_0001>
module attributes {stable_mosaic.version = 11 : i64} {
  func.func @_dual_kernel(%arg0: i32, %arg1: memref<8x56xf32, #tpu.memory_space<vmem>>, %arg2: memref<56x32xf32, #tpu.memory_space<vmem>>, %arg3: memref<1x32xf32, #tpu.memory_space<vmem>>, %arg4: memref<32x128xf32, #tpu.memory_space<vmem>>, %arg5: memref<1x128xf32, #tpu.memory_space<vmem>>, %arg6: memref<8x128xf32, #tpu.memory_space<vmem>>) attributes {dimension_semantics = [#tpu.dimension_semantics<parallel>], iteration_bounds = array<i64: 1>, scalar_prefetch = 0 : i64, scratch_operands = 0 : i64, tpu.core_type = #tpu.core_type<tc>, window_params = [{transform_indices = @transform_0, window_bounds = array<i64: 8, 56>}, {pipeline_mode = #tpu.pipeline_mode<synchronous>, transform_indices = @transform_1, window_bounds = array<i64: 56, 32>}, {pipeline_mode = #tpu.pipeline_mode<synchronous>, transform_indices = @transform_2, window_bounds = array<i64: 1, 32>}, {pipeline_mode = #tpu.pipeline_mode<synchronous>, transform_indices = @transform_3, window_bounds = array<i64: 32, 128>}, {pipeline_mode = #tpu.pipeline_mode<synchronous>, transform_indices = @transform_4, window_bounds = array<i64: 1, 128>}, {transform_indices = @transform_5, window_bounds = array<i64: 8, 128>}]} {
    %c0 = arith.constant 0 : index
    %c0_0 = arith.constant 0 : index
    %0 = vector.load %arg1[%c0, %c0_0] : memref<8x56xf32, #tpu.memory_space<vmem>>, vector<8x56xf32>
    %c0_1 = arith.constant 0 : index
    %c0_2 = arith.constant 0 : index
    %1 = vector.load %arg2[%c0_1, %c0_2] : memref<56x32xf32, #tpu.memory_space<vmem>>, vector<56x32xf32>
    %cst = arith.constant dense<0.000000e+00> : vector<8x32xf32>
    %2 = tpu.matmul %0, %1, %cst {dimension_numbers = #tpu.dot_dimension_numbers<[1], [0], [0], [1], [0, 0, 1, 1], [], []>} : vector<8x56xf32>, vector<56x32xf32>, vector<8x32xf32> -> vector<8x32xf32>
    %c0_3 = arith.constant 0 : index
    %c0_4 = arith.constant 0 : index
    %3 = vector.load %arg3[%c0_3, %c0_4] : memref<1x32xf32, #tpu.memory_space<vmem>>, vector<1x32xf32>
    %4 = vector.broadcast %3 : vector<1x32xf32> to vector<8x32xf32>
    %5 = arith.addf %2, %4 : vector<8x32xf32>
    %c0_5 = arith.constant 0 : index
    %c0_6 = arith.constant 0 : index
    %6 = vector.load %arg4[%c0_5, %c0_6] : memref<32x128xf32, #tpu.memory_space<vmem>>, vector<32x128xf32>
    %cst_7 = arith.constant dense<0.000000e+00> : vector<8x128xf32>
    %7 = tpu.matmul %5, %6, %cst_7 {dimension_numbers = #tpu.dot_dimension_numbers<[1], [0], [0], [1], [0, 0, 1, 1], [], []>} : vector<8x32xf32>, vector<32x128xf32>, vector<8x128xf32> -> vector<8x128xf32>
    %c0_8 = arith.constant 0 : index
    %c0_9 = arith.constant 0 : index
    %8 = vector.load %arg5[%c0_8, %c0_9] : memref<1x128xf32, #tpu.memory_space<vmem>>, vector<1x128xf32>
    %9 = vector.broadcast %8 : vector<1x128xf32> to vector<8x128xf32>
    %10 = arith.addf %7, %9 : vector<8x128xf32>
    %c0_10 = arith.constant 0 : index
    %c0_11 = arith.constant 0 : index
    %11 = vector.load %arg6[%c0_10, %c0_11] : memref<8x128xf32, #tpu.memory_space<vmem>>, vector<8x128xf32>
    tpu.vector_store %arg6[%c0_10, %c0_11], %10 {strides = array<i32>} : memref<8x128xf32, #tpu.memory_space<vmem>>, vector<8x128xf32>,
    return
  }
  func.func @transform_0(%arg0: i32) -> (i32, i32) {
    %c0_i32 = arith.constant 0 : i32
    %c0_i32_0 = arith.constant 0 : i32
    return %arg0, %c0_i32 : i32, i32
  }
  func.func @transform_1(%arg0: i32) -> (i32, i32) {
    %c0_i32 = arith.constant 0 : i32
    %c0_i32_0 = arith.constant 0 : i32
    %c0_i32_1 = arith.constant 0 : i32
    return %c0_i32, %c0_i32_0 : i32, i32
  }
  func.func @transform_2(%arg0: i32) -> (i32, i32) {
    %c0_i32 = arith.constant 0 : i32
    %c0_i32_0 = arith.constant 0 : i32
    %c0_i32_1 = arith.constant 0 : i32
    return %c0_i32, %c0_i32_0 : i32, i32
  }
  func.func @transform_3(%arg0: i32) -> (i32, i32) {
    %c0_i32 = arith.constant 0 : i32
    %c0_i32_0 = arith.constant 0 : i32
    %c0_i32_1 = arith.constant 0 : i32
    return %c0_i32, %c0_i32_0 : i32, i32
  }
  func.func @transform_4(%arg0: i32) -> (i32, i32) {
    %c0_i32 = arith.constant 0 : i32
    %c0_i32_0 = arith.constant 0 : i32
    %c0_i32_1 = arith.constant 0 : i32
    return %c0_i32, %c0_i32_0 : i32, i32
  }
  func.func @transform_5(%arg0: i32) -> (i32, i32) {
    %c0_i32 = arith.constant 0 : i32
    %c0_i32_0 = arith.constant 0 : i32
    return %arg0, %c0_i32 : i32, i32
  }
}

</mosaic_0001>

<llo_original>
// kernel: simple_dual_forward.1
$region0: #{simple_dual_forward.1}
  #allocation0 [shape = 'u32[]', space=smem, size = 0x4, offset = 0x4, fixed_abs, tag = 'smem constant byte address 0x4 - core index']
  #allocation1 [shape = 'u32[144,128]{1,0:T(1,128)}', space=vmem, size = 0x12000, scoped, tag = 'internal scratch']
  %s0 = inlined_call_operand.vmem [shape: f32[8,56], index: 0, kind: input, shape index: {}]
  %s1 = inlined_call_operand.vmem [shape: f32[56,32], index: 1, kind: input, shape index: {}]
  %s2 = inlined_call_operand.vmem [shape: f32[1,32], index: 2, kind: input, shape index: {}]
  %s3 = inlined_call_operand.vmem [shape: f32[32,128], index: 3, kind: input, shape index: {}]
  %s4 = inlined_call_operand.vmem [shape: f32[1,128], index: 4, kind: input, shape index: {}]
  %s5 = inlined_call_operand.vmem [shape: f32[8,128], index: 5, kind: output, shape index: {}]
  %s6 = sld [smem:[#allocation0]]
  $region30: #{simple_dual_forward.1} parent=0
    _
  %s8 = ssub.s32 1, %s6
  %s9 = scalar_select 0, %s8, %s6
  // Predicated region
  $region2: #{simple_dual_forward.1} parent=0 // pred_check
    _
  $region3: #{simple_dual_forward.1} parent=0 // pred_check_branch
    %11 = sbr.rel (0) target = $region5
  $region4: #{simple_dual_forward.1} parent=0 // pred_region
    _
  $region5: #{simple_dual_forward.1} parent=0 // pred_fallthru
    _
  // Predicated region
  $region6: #{simple_dual_forward.1} parent=0 // pred_check
    _
  $region7: #{simple_dual_forward.1} parent=0 // pred_check_branch
    %13 = sbr.rel (0) target = $region9
  $region8: #{simple_dual_forward.1} parent=0 // pred_region
    _
  $region9: #{simple_dual_forward.1} parent=0 // pred_fallthru
    _
  // Predicated region
  $region10: #{simple_dual_forward.1} parent=0 // pred_check
    _
  $region11: #{simple_dual_forward.1} parent=0 // pred_check_branch
    %15 = sbr.rel (0) target = $region13
  $region12: #{simple_dual_forward.1} parent=0 // pred_region
    _
  $region13: #{simple_dual_forward.1} parent=0 // pred_fallthru
    _
  // Predicated region
  $region14: #{simple_dual_forward.1} parent=0 // pred_check
    _
  $region15: #{simple_dual_forward.1} parent=0 // pred_check_branch
    %17 = sbr.rel (0) target = $region17
  $region16: #{simple_dual_forward.1} parent=0 // pred_region
    _
  $region17: #{simple_dual_forward.1} parent=0 // pred_fallthru
    _
  // Predicated region
  $region18: #{simple_dual_forward.1} parent=0 // pred_check
    _
  $region19: #{simple_dual_forward.1} parent=0 // pred_check_branch
    %19 = sbr.rel (0) target = $region21
  $region20: #{simple_dual_forward.1} parent=0 // pred_region
    _
  $region21: #{simple_dual_forward.1} parent=0 // pred_fallthru
    _
  %v20 = vld [vmem:[%s0] sm:$0xff]
  %v21 = vld [vmem:[%s1] sm:$0xff]
  %v22 = vld [vmem:[%s1 + $0x8] sm:$0xff]
  %v23 = vld [vmem:[%s1 + $0x10] sm:$0xff]
  %v24 = vld [vmem:[%s1 + $0x18] sm:$0xff]
  %v25 = vld [vmem:[%s1 + $0x20] sm:$0xff]
  %v26 = vld [vmem:[%s1 + $0x28] sm:$0xff]
  %v27 = vld [vmem:[%s1 + $0x30] sm:$0xff]
  %v28 = vld [vmem:[%s2] sm:$0x1]
  %v30 = vlaneseq
  %v31 = vshrl.u32 %v30, 7
  %v32 = vsub.s32 0, %v31
  %v33 = vrot.slane %v28, %v32
  %vm35 = vcmask 457728
  %v37 = vsel %vm35, %v20, 0
  %39 = vmatprep.subr.mxu0 0.0
  %40 = vmatpush1.msra.mxu0 0.0
  %41 = vmatprep.subr.mxu0 0.0
  %42 = vmatpush1.msra.mxu0 0.0
  %43 = vmatprep.subr.mxu0 0.0
  %44 = vmatpush1.msra.mxu0 0.0
  %45 = vmatprep.subr.mxu0 0.0
  %46 = vmatpush1.msra.mxu0 0.0
  %47 = vmatprep.subr.mxu0 0.0
  %48 = vmatpush1.msra.mxu0 0.0
  %49 = vmatprep.subr.mxu0 0.0
  %50 = vmatpush1.msra.mxu0 0.0
  %51 = vmatprep.subr.mxu0 0.0
  %52 = vmatpush1.msra.mxu0 0.0
  %53 = vmatprep.subr.mxu0 0.0
  %54 = vmatpush1.msra.mxu0 0.0
  %55 = vmatprep.subr.mxu0 0.0
  %56 = vmatpush1.msra.mxu0 0.0
  %57 = vmatprep.subr.mxu0 0.0
  %58 = vmatpush1.msra.mxu0 %v27
  %59 = vmatprep.subr.mxu0 0.0
  %60 = vmatpush1.msra.mxu0 %v26
  %61 = vmatprep.subr.mxu0 0.0
  %62 = vmatpush1.msra.mxu0 %v25
  %63 = vmatprep.subr.mxu0 0.0
  %64 = vmatpush1.msra.mxu0 %v24
  %65 = vmatprep.subr.mxu0 0.0
  %66 = vmatpush1.msra.mxu0 %v23
  %67 = vmatprep.subr.mxu0 0.0
  %68 = vmatpush1.msra.mxu0 %v22
  %69 = vmatprep.subr.mxu0 0.0
  %70 = vmatpush1.msra.mxu0 %v21
  %71 = vmatprep.subr.mxu0 0.0
  %72 = vmatpush2.msra.mxu0 0.0
  %73 = vmatprep.subr.mxu0 0.0
  %74 = vmatpush2.msra.mxu0 0.0
  %75 = vmatprep.subr.mxu0 0.0
  %76 = vmatpush2.msra.mxu0 0.0
  %77 = vmatprep.subr.mxu0 0.0
  %78 = vmatpush2.msra.mxu0 0.0
  %79 = vmatprep.subr.mxu0 0.0
  %80 = vmatpush2.msra.mxu0 0.0
  %81 = vmatprep.subr.mxu0 0.0
  %82 = vmatpush2.msra.mxu0 0.0
  %83 = vmatprep.subr.mxu0 0.0
  %84 = vmatpush2.msra.mxu0 0.0
  %85 = vmatprep.subr.mxu0 0.0
  %86 = vmatpush2.msra.mxu0 0.0
  %87 = vmatprep.subr.mxu0 0.0
  %88 = vmatpush2.msra.mxu0 0.0
  %89 = vmatprep.subr.mxu0 0.0
  %90 = vmatpush2.msra.mxu0 0.0
  %91 = vmatprep.subr.mxu0 0.0
  %92 = vmatpush2.msra.mxu0 0.0
  %93 = vmatprep.subr.mxu0 0.0
  %94 = vmatpush2.msra.mxu0 0.0
  %95 = vmatprep.subr.mxu0 0.0
  %96 = vmatpush2.msra.mxu0 0.0
  %97 = vmatprep.subr.mxu0 0.0
  %98 = vmatpush2.msra.mxu0 0.0
  %99 = vmatprep.subr.mxu0 0.0
  %100 = vmatpush2.msra.mxu0 0.0
  %101 = vmatprep.subr.mxu0 0.0
  %102 = vmatpush2.msra.mxu0 0.0
  %103 = vmatprep.mubr.f32.mxu0 0.0
  %104 = vmatmul.mubr.f32.gmra.mxu0 %v37
  %v105 = vpop.f32.mrf.mxu0
  %v106 = vadd.f32 %v33, %v105
  %v107 = vpop.f32.mrf.mxu0
  %108 = vdwg.mxu0
  %v109 = vld [vmem:[%s3] sm:$0xff]
  %v110 = vld [vmem:[%s3 + $0x8] sm:$0xff]
  %v111 = vld [vmem:[%s3 + $0x10] sm:$0xff]
  %v112 = vld [vmem:[%s3 + $0x18] sm:$0xff]
  %v113 = vld [vmem:[%s4] sm:$0x1]
  %v115 = vlaneseq
  %v116 = vshrl.u32 %v115, 7
  %v117 = vsub.s32 0, %v116
  %v118 = vrot.slane %v113, %v117
  %vm120 = vcmask 261120
  %v122 = vsel %vm120, %v106, 0
  %124 = vmatprep.subr.mxu0 0.0
  %125 = vmatpush1.msra.mxu0 0.0
  %126 = vmatprep.subr.mxu0 0.0
  %127 = vmatpush1.msra.mxu0 0.0
  %128 = vmatprep.subr.mxu0 0.0
  %129 = vmatpush1.msra.mxu0 0.0
  %130 = vmatprep.subr.mxu0 0.0
  %131 = vmatpush1.msra.mxu0 0.0
  %132 = vmatprep.subr.mxu0 0.0
  %133 = vmatpush1.msra.mxu0 0.0
  %134 = vmatprep.subr.mxu0 0.0
  %135 = vmatpush1.msra.mxu0 0.0
  %136 = vmatprep.subr.mxu0 0.0
  %137 = vmatpush1.msra.mxu0 0.0
  %138 = vmatprep.subr.mxu0 0.0
  %139 = vmatpush1.msra.mxu0 0.0
  %140 = vmatprep.subr.mxu0 0.0
  %141 = vmatpush1.msra.mxu0 0.0
  %142 = vmatprep.subr.mxu0 0.0
  %143 = vmatpush1.msra.mxu0 0.0
  %144 = vmatprep.subr.mxu0 0.0
  %145 = vmatpush1.msra.mxu0 0.0
  %146 = vmatprep.subr.mxu0 0.0
  %147 = vmatpush1.msra.mxu0 0.0
  %148 = vmatprep.subr.mxu0 0.0
  %149 = vmatpush1.msra.mxu0 %v112
  %150 = vmatprep.subr.mxu0 0.0
  %151 = vmatpush1.msra.mxu0 %v111
  %152 = vmatprep.subr.mxu0 0.0
  %153 = vmatpush1.msra.mxu0 %v110
  %154 = vmatprep.subr.mxu0 0.0
  %155 = vmatpush1.msra.mxu0 %v109
  %156 = vmatprep.subr.mxu0 0.0
  %157 = vmatpush2.msra.mxu0 0.0
  %158 = vmatprep.subr.mxu0 0.0
  %159 = vmatpush2.msra.mxu0 0.0
  %160 = vmatprep.subr.mxu0 0.0
  %161 = vmatpush2.msra.mxu0 0.0
  %162 = vmatprep.subr.mxu0 0.0
  %163 = vmatpush2.msra.mxu0 0.0
  %164 = vmatprep.subr.mxu0 0.0
  %165 = vmatpush2.msra.mxu0 0.0
  %166 = vmatprep.subr.mxu0 0.0
  %167 = vmatpush2.msra.mxu0 0.0
  %168 = vmatprep.subr.mxu0 0.0
  %169 = vmatpush2.msra.mxu0 0.0
  %170 = vmatprep.subr.mxu0 0.0
  %171 = vmatpush2.msra.mxu0 0.0
  %172 = vmatprep.subr.mxu0 0.0
  %173 = vmatpush2.msra.mxu0 0.0
  %174 = vmatprep.subr.mxu0 0.0
  %175 = vmatpush2.msra.mxu0 0.0
  %176 = vmatprep.subr.mxu0 0.0
  %177 = vmatpush2.msra.mxu0 0.0
  %178 = vmatprep.subr.mxu0 0.0
  %179 = vmatpush2.msra.mxu0 0.0
  %180 = vmatprep.subr.mxu0 0.0
  %181 = vmatpush2.msra.mxu0 0.0
  %182 = vmatprep.subr.mxu0 0.0
  %183 = vmatpush2.msra.mxu0 0.0
  %184 = vmatprep.subr.mxu0 0.0
  %185 = vmatpush2.msra.mxu0 0.0
  %186 = vmatprep.subr.mxu0 0.0
  %187 = vmatpush2.msra.mxu0 0.0
  %188 = vmatprep.mubr.f32.mxu0 0.0
  %189 = vmatmul.mubr.f32.gmra.mxu0 %v122
  %v190 = vpop.f32.mrf.mxu0
  %v191 = vadd.f32 %v118, %v190
  %v192 = vpop.f32.mrf.mxu0
  %193 = vdwg.mxu0
  %194 = vst [vmem:[%s5] sm:$0xff] %v191
  // Predicated region
  $region22: #{simple_dual_forward.1} parent=0 // pred_check
    _
  $region23: #{simple_dual_forward.1} parent=0 // pred_check_branch
    %196 = sbr.rel (0) target = $region25
  $region24: #{simple_dual_forward.1} parent=0 // pred_region
    _
  $region25: #{simple_dual_forward.1} parent=0 // pred_fallthru
    _
  // Predicated region
  $region26: #{simple_dual_forward.1} parent=0 // pred_check
    _
  $region27: #{simple_dual_forward.1} parent=0 // pred_check_branch
    %198 = sbr.rel (0) target = $region29
  $region28: #{simple_dual_forward.1} parent=0 // pred_region
    _
  $region29: #{simple_dual_forward.1} parent=0 // pred_fallthru
    _

</llo_original>
